<compile_context>
chip_gen: v5e
topology: v5e:2x2
jax: 0.10.0
libtpu: 0.0.40
codegen_flags: <defaults>
</compile_context>

<pallas_src>
import jax
import jax.numpy as jnp
from jax import lax
from jax.experimental import pallas as pl
from jax.experimental.pallas import tpu as pltpu

LANES = 128
SUBLANES = 8
TILE_ELEMS = SUBLANES * LANES   # 1024 elements = one (8,128) f32 vreg tile
MAX_TM = 8192                   # rows per grid step: 4 MiB per f32 input block
CHUNK_ROWS = 256                # inner-loop granularity: 32 vregs per input


def _num_tensorcores() -> int:
    """Best-effort TensorCores-per-chip (v5e/v6e: 1, v7x: 2). Defaults to 1."""
    try:
        info = pltpu.get_tpu_info()
        for attr in ("num_cores", "core_count", "num_tensorcores", "tensorcore_count"):
            v = getattr(info, attr, None)
            if isinstance(v, int) and v > 0:
                return v
    except Exception:
        pass
    try:
        kind = jax.devices()[0].device_kind.lower()
        if "v5" in kind or "v6" in kind:
            return 1
        if "7" in kind:   # e.g. "TPU7x" / "TPU v7x"
            return 2
    except Exception:
        pass
    return 1


def _make_loss_kernel(tm: int, rows: int, steps_per_chunk: int,
                      chunk_rows: int, ragged_possible: bool):
    """Kernel body: accumulates per-block vreg partials of sum|d| and sum d^2."""
    n_chunks = tm // chunk_rows

    def kernel(pred_ref, target_ref, out_abs_ref, out_sq_ref):
        c = pl.program_id(0)
        i = pl.program_id(1)

        @pl.when(i == 0)
        def _():
            out_abs_ref[...] = jnp.zeros_like(out_abs_ref)
            out_sq_ref[...] = jnp.zeros_like(out_sq_ref)

        # Logical (unclamped) starting row of this grid step.
        row_start = (c * steps_per_chunk + i) * tm
        zeros = jnp.zeros((SUBLANES, LANES), jnp.float32)

        def chunk_partials(g, valid):
            # Fused single pass over one small row chunk: both reductions are
            # computed before the chunk's vregs die, so no large VMEM temp.
            r0 = pl.multiple_of(g * chunk_rows, chunk_rows)
            d = (pred_ref[pl.ds(r0, chunk_rows), :].astype(jnp.float32)
                 - target_ref[pl.ds(r0, chunk_rows), :].astype(jnp.float32))
            if valid is not None:
                row_ids = lax.broadcasted_iota(jnp.int32, (chunk_rows, LANES), 0) + r0
                d = jnp.where(row_ids < valid, d, 0.0)
            # (chunk,128) -> (chunk//8, 8, 128): leading-axis sum is pure VALU.
            d3 = d.reshape(chunk_rows // SUBLANES, SUBLANES, LANES)
            return jnp.sum(jnp.abs(d3), axis=0), jnp.sum(d3 * d3, axis=0)

        def reduce_block(valid):
            def body(g, carry):
                acc_abs, acc_sq = carry
                pa, ps = chunk_partials(g, valid)
                return acc_abs + pa, acc_sq + ps

            acc_abs, acc_sq = lax.fori_loop(0, n_chunks, body, (zeros, zeros))
            out_abs_ref[...] += acc_abs
            out_sq_ref[...] += acc_sq

        if not ragged_possible:
            reduce_block(None)
        else:
            is_full = row_start + tm <= rows

            @pl.when(is_full)
            def _():
                reduce_block(None)

            @pl.when(jnp.logical_not(is_full))
            def _():
                # Boundary (or clamped duplicate) block: rows >= `rows` contain
                # garbage / duplicate data -> masked to zero (select, not mul,
                # so garbage NaN/Inf never propagates).
                reduce_block(rows - row_start)

    return kernel


def combined_loss(pred, target, alpha: float = 0.8, beta: float = 0.2):
    assert pred.shape == target.shape, "pred/target must have identical shapes"
    n = pred.size
    assert n > 0

    p_flat = pred.reshape(-1)
    t_flat = target.reshape(-1)

    tail = n % TILE_ELEMS
    aligned = n - tail

    abs_sum = jnp.float32(0.0)
    sq_sum = jnp.float32(0.0)

    if aligned > 0:
        # Only the tile-aligned prefix streams through the kernel (no jnp.pad;
        # for typical NN tensors tail == 0 and these are free reshapes).
        p_head = p_flat if tail == 0 else lax.slice(p_flat, (0,), (aligned,))
        t_head = t_flat if tail == 0 else lax.slice(t_flat, (0,), (aligned,))
        rows = aligned // LANES          # multiple of SUBLANES
        p2 = p_head.reshape(rows, LANES)
        t2 = t_head.reshape(rows, LANES)

        # Row tile: ~4 MiB per f32 input block at tm=8192 -> 16 MiB with two
        # double-buffered inputs; vmem_limit_bytes below keeps this legal on
        # v5e's 16 MiB scoped default and inside v7x's 64 MiB physical VMEM.
        if rows >= MAX_TM:
            tm = MAX_TM
        elif rows >= CHUNK_ROWS:
            tm = (rows // CHUNK_ROWS) * CHUNK_ROWS
        else:
            tm = rows
        chunk_rows = min(CHUNK_ROWS, tm)
        total_blocks = pl.cdiv(rows, tm)

        # Split rows across TensorCores only on multi-TC chips (v7x); single-TC
        # chips would otherwise pay a redundant clamped duplicate-block DMA.
        num_tc = _num_tensorcores()
        nchunk = num_tc if (num_tc > 1 and total_blocks >= num_tc) else 1
        steps = pl.cdiv(total_blocks, nchunk)
        ragged_possible = (rows % tm != 0) or (total_blocks % nchunk != 0)

        kernel = _make_loss_kernel(tm, rows, steps, chunk_rows, ragged_possible)

        if nchunk == 1:
            in_map = lambda c, i: (i, 0)
        else:
            def in_map(c, i):
                # Clamp logically-OOB block indices onto the last real block;
                # those steps are fully masked in-kernel, contributing zero.
                return (jnp.minimum(c * steps + i, total_blocks - 1), 0)

        itemsize = jnp.dtype(pred.dtype).itemsize
        out_bytes = 2 * nchunk * SUBLANES * LANES * 4
        cost = pl.CostEstimate(
            flops=5 * aligned,            # sub, abs, mul, 2 accumulate adds / elem
            transcendentals=0,
            bytes_accessed=2 * aligned * itemsize + out_bytes,
        )

        out_abs, out_sq = pl.pallas_call(
            kernel,
            out_shape=(
                jax.ShapeDtypeStruct((nchunk * SUBLANES, LANES), jnp.float32),
                jax.ShapeDtypeStruct((nchunk * SUBLANES, LANES), jnp.float32),
            ),
            grid_spec=pltpu.PrefetchScalarGridSpec(
                num_scalar_prefetch=0,
                grid=(nchunk, steps),
                in_specs=[
                    pl.BlockSpec((tm, LANES), in_map),
                    pl.BlockSpec((tm, LANES), in_map),
                ],
                out_specs=[
                    pl.BlockSpec((SUBLANES, LANES), lambda c, i: (c, 0)),
                    pl.BlockSpec((SUBLANES, LANES), lambda c, i: (c, 0)),
                ],
            ),
            compiler_params=pltpu.CompilerParams(
                # TODO(synk): on v7x, verify "parallel" actually shards the two
                # TensorCores; if profiling shows one TC doing all steps, switch
                # the leading axis to pltpu.CORE_PARALLEL.
                dimension_semantics=("parallel", "arbitrary"),
                vmem_limit_bytes=32 * 1024 * 1024,
            ),
            cost_estimate=cost,
        )(p2, t2)

        abs_sum = abs_sum + jnp.sum(out_abs)
        sq_sum = sq_sum + jnp.sum(out_sq)

    if tail > 0:
        # <1024-element ragged tail: cheaper in plain JAX than padding/copying
        # the full tensors just to make them tile-aligned.
        d_tail = (lax.slice(p_flat, (aligned,), (n,)).astype(jnp.float32)
                  - lax.slice(t_flat, (aligned,), (n,)).astype(jnp.float32))
        abs_sum = abs_sum + jnp.sum(jnp.abs(d_tail))
        sq_sum = sq_sum + jnp.sum(d_tail * d_tail)

    inv_n = 1.0 / float(n)
    return (alpha * inv_n) * abs_sum + (beta * inv_n) * sq_sum


if __name__ == "__main__":
    key = jax.random.PRNGKey(0)

    def reference(pred, target, alpha=0.8, beta=0.2):
        d = pred.astype(jnp.float32) - target.astype(jnp.float32)
        return alpha * jnp.mean(jnp.abs(d)) + beta * jnp.mean(d * d)

    cases = [
        ((2, 4, 16, 16), jnp.float32),    # main small NCHW case: single block
        ((2, 4, 16, 16), jnp.bfloat16),   # native-dtype streaming, in-kernel upcast
        ((3, 700), jnp.float32),          # aligned prefix + 52-element JAX tail
        ((2, 3, 5, 16), jnp.float32),     # 480 elems -> pure-tail fallback path
        ((41, 8, 128), jnp.float32),      # rows=328 -> tm=256, ragged masked block
        ((40, 16, 64, 64), jnp.float32),  # rows=20480 -> tm=8192, 3 blocks, ragged
    ]
    for shp, dt in cases:
        k1, k2, key = jax.random.split(key, 3)
        pred = jax.random.normal(k1, shp, dtype=jnp.float32).astype(dt)
        target = jax.random.normal(k2, shp, dtype=jnp.float32).astype(dt)

        loss = jax.block_until_ready(combined_loss(pred, target, alpha=0.8, beta=0.2))
        ref = jax.block_until_ready(reference(pred, target, alpha=0.8, beta=0.2))
        assert jnp.allclose(loss, ref, rtol=2e-5, atol=1e-6), (shp, dt, loss, ref)

    print("KERNEL_OK")
</pallas_src>

<mosaic_0001>
module attributes {stable_mosaic.version = 11 : i64} {
  func.func @kernel(%arg0: i32, %arg1: i32, %arg2: memref<16x128xf32, #tpu.memory_space<vmem>>, %arg3: memref<16x128xf32, #tpu.memory_space<vmem>>, %arg4: memref<8x128xf32, #tpu.memory_space<vmem>>, %arg5: memref<8x128xf32, #tpu.memory_space<vmem>>) attributes {dimension_semantics = [#tpu.dimension_semantics<parallel>, #tpu.dimension_semantics<arbitrary>], iteration_bounds = array<i64: 1, 1>, scalar_prefetch = 0 : i64, scratch_operands = 0 : i64, tpu.core_type = #tpu.core_type<tc>, window_params = [{transform_indices = @transform_0, window_bounds = array<i64: 16, 128>}, {transform_indices = @transform_1, window_bounds = array<i64: 16, 128>}, {transform_indices = @transform_2, window_bounds = array<i64: 8, 128>}, {transform_indices = @transform_3, window_bounds = array<i64: 8, 128>}]} {
    %c0_i32 = arith.constant 0 : i32
    %0 = arith.cmpi eq, %arg1, %c0_i32 : i32
    %1 = arith.extui %0 : i1 to i32
    %c0_i32_0 = arith.constant 0 : i32
    %2 = arith.cmpi ne, %1, %c0_i32_0 : i32
    scf.if %2 {
      %cst_13 = arith.constant 0.000000e+00 : f32
      %24 = vector.broadcast %cst_13 : f32 to vector<8x128xf32>
      %c0_14 = arith.constant 0 : index
      %c0_15 = arith.constant 0 : index
      %25 = vector.load %arg4[%c0_14, %c0_15] : memref<8x128xf32, #tpu.memory_space<vmem>>, vector<8x128xf32>
      tpu.vector_store %arg4[%c0_14, %c0_15], %24 {strides = array<i32>} : memref<8x128xf32, #tpu.memory_space<vmem>>, vector<8x128xf32>,
      %cst_16 = arith.constant 0.000000e+00 : f32
      %26 = vector.broadcast %cst_16 : f32 to vector<8x128xf32>
      %c0_17 = arith.constant 0 : index
      %c0_18 = arith.constant 0 : index
      %27 = vector.load %arg5[%c0_17, %c0_18] : memref<8x128xf32, #tpu.memory_space<vmem>>, vector<8x128xf32>
      tpu.vector_store %arg5[%c0_17, %c0_18], %26 {strides = array<i32>} : memref<8x128xf32, #tpu.memory_space<vmem>>, vector<8x128xf32>,
    } else {
    }
    %cst = arith.constant 0.000000e+00 : f32
    %3 = vector.broadcast %cst : f32 to vector<8x128xf32>
    %c0_i32_1 = arith.constant 0 : i32
    %c16_i32 = arith.constant 16 : i32
    %4 = arith.muli %c0_i32_1, %c16_i32 : i32
    %5 = tpu.assume_multiple %4, 16 : i32
    %6 = arith.index_cast %5 : i32 to index
    %c0 = arith.constant 0 : index
    %7 = vector.load %arg2[%6, %c0] : memref<16x128xf32, #tpu.memory_space<vmem>>, vector<16x128xf32>
    %8 = arith.index_cast %5 : i32 to index
    %c0_2 = arith.constant 0 : index
    %9 = vector.load %arg3[%8, %c0_2] : memref<16x128xf32, #tpu.memory_space<vmem>>, vector<16x128xf32>
    %10 = arith.subf %7, %9 : vector<16x128xf32>
    %11 = vector.shape_cast %10 : vector<16x128xf32> to vector<2x8x128xf32>
    %12 = math.absf %11 : vector<2x8x128xf32>
    %cst_3 = arith.constant dense<0.000000e+00> : vector<8x128xf32>
    %13 = vector.multi_reduction <add>, %12, %cst_3 [0] : vector<2x8x128xf32> to vector<8x128xf32>
    %14 = arith.mulf %11, %11 : vector<2x8x128xf32>
    %cst_4 = arith.constant dense<0.000000e+00> : vector<8x128xf32>
    %15 = vector.multi_reduction <add>, %14, %cst_4 [0] : vector<2x8x128xf32> to vector<8x128xf32>
    %16 = arith.addf %3, %13 : vector<8x128xf32>
    %17 = arith.addf %3, %15 : vector<8x128xf32>
    %c1_i32 = arith.constant 1 : i32
    %c0_5 = arith.constant 0 : index
    %c0_6 = arith.constant 0 : index
    %18 = vector.load %arg4[%c0_5, %c0_6] : memref<8x128xf32, #tpu.memory_space<vmem>>, vector<8x128xf32>
    %19 = arith.addf %18, %16 : vector<8x128xf32>
    %c0_7 = arith.constant 0 : index
    %c0_8 = arith.constant 0 : index
    %20 = vector.load %arg4[%c0_7, %c0_8] : memref<8x128xf32, #tpu.memory_space<vmem>>, vector<8x128xf32>
    tpu.vector_store %arg4[%c0_7, %c0_8], %19 {strides = array<i32>} : memref<8x128xf32, #tpu.memory_space<vmem>>, vector<8x128xf32>,
    %c0_9 = arith.constant 0 : index
    %c0_10 = arith.constant 0 : index
    %21 = vector.load %arg5[%c0_9, %c0_10] : memref<8x128xf32, #tpu.memory_space<vmem>>, vector<8x128xf32>
    %22 = arith.addf %21, %17 : vector<8x128xf32>
    %c0_11 = arith.constant 0 : index
    %c0_12 = arith.constant 0 : index
    %23 = vector.load %arg5[%c0_11, %c0_12] : memref<8x128xf32, #tpu.memory_space<vmem>>, vector<8x128xf32>
    tpu.vector_store %arg5[%c0_11, %c0_12], %22 {strides = array<i32>} : memref<8x128xf32, #tpu.memory_space<vmem>>, vector<8x128xf32>,
    return
  }
  func.func @transform_0(%arg0: i32, %arg1: i32) -> (i32, i32) {
    %c0_i32 = arith.constant 0 : i32
    %c0_i32_0 = arith.constant 0 : i32
    return %arg1, %c0_i32 : i32, i32
  }
  func.func @transform_1(%arg0: i32, %arg1: i32) -> (i32, i32) {
    %c0_i32 = arith.constant 0 : i32
    %c0_i32_0 = arith.constant 0 : i32
    return %arg1, %c0_i32 : i32, i32
  }
  func.func @transform_2(%arg0: i32, %arg1: i32) -> (i32, i32) {
    %c0_i32 = arith.constant 0 : i32
    %c0_i32_0 = arith.constant 0 : i32
    return %arg0, %c0_i32 : i32, i32
  }
  func.func @transform_3(%arg0: i32, %arg1: i32) -> (i32, i32) {
    %c0_i32 = arith.constant 0 : i32
    %c0_i32_0 = arith.constant 0 : i32
    return %arg0, %c0_i32 : i32, i32
  }
}

</mosaic_0001>

<llo_original>
// kernel: tpu_custom_call.1
$region0: #{tpu_custom_call.1}
  #allocation0 [shape = 'u32[]', space=smem, size = 0x4, offset = 0x4, fixed_abs, tag = 'smem constant byte address 0x4 - core index']
  #allocation1 [shape = 'u32[72,128]{1,0:T(1,128)}', space=vmem, size = 0x9000, scoped, tag = 'internal scratch']
  %s0 = inlined_call_operand.hbm [shape: f32[16,128], index: 0, kind: input, shape index: {}]
  %s1 = inlined_call_operand.hbm [shape: f32[16,128], index: 1, kind: input, shape index: {}]
  %s2 = inlined_call_operand.hbm [shape: f32[8,128], index: 2, kind: output, shape index: {0}]
  %s3 = inlined_call_operand.hbm [shape: f32[8,128], index: 3, kind: output, shape index: {1}]
  %4 = xla_tuple %s2, %s3
  %s5 = sld [smem:[#allocation0]]
  $region38: #{tpu_custom_call.1} parent=0
    _
  %s7 = ssub.s32 1, %s5
  %s8 = scalar_select 0, %s7, %s5
  $region1: #{tpu_custom_call.1} parent=0
    #allocation2 [shape = 'u8[8192]{0}', space=vmem, size = 0x2000, scoped, tag = 'input window, operand 0, single buffered']
    #allocation3 [shape = 's32[1]{0}', space=sflag, size = 0x4, scoped, tag = 'scoped memory for tpu_custom_call.1']
    #allocation4 [shape = 's32[1]{0}', space=sflag, size = 0x4, scoped, tag = 'scoped memory for tpu_custom_call.1']
    #allocation5 [shape = 'u8[8192]{0}', space=vmem, size = 0x2000, scoped, tag = 'input window, operand 1, single buffered']
    #allocation6 [shape = 's32[1]{0}', space=sflag, size = 0x4, scoped, tag = 'scoped memory for tpu_custom_call.1']
    #allocation7 [shape = 'u8[4096]{0}', space=vmem, size = 0x1000, scoped, tag = 'output window, operand 0, single buffered']
    #allocation8 [shape = 'u8[4096]{0}', space=vmem, size = 0x1000, scoped, tag = 'output window, operand 1, single buffered']
    #allocation9 [shape = 's32[1]{0}', space=sflag, size = 0x4, scoped, tag = 'scoped memory for tpu_custom_call.1']
    %9 = vsyncpa [#allocation3], 0
    %10 = vsyncpa [#allocation6], 0
    %11 = vsyncpa [#allocation4], 0
    %12 = vsyncpa [#allocation9], 0
    // Predicated region
    $region2: #{tpu_custom_call.1} parent=1 // pred_check
      _
    $region3: #{tpu_custom_call.1} parent=1 // pred_check_branch
      %14 = sbr.rel (0) target = $region5
    $region4: #{tpu_custom_call.1} parent=1 // pred_region
      %16 = vsyncadd [#allocation3], 0
      %s17 = sshll.u32 %s0, 4
      %s18 = int_to_ptr.hbm [resolvable:$true] %s17
      %s19 = sshll.u32 [#allocation2], 4
      %s20 = int_to_ptr.vmem [resolvable:$true] %s19
      %25 = dma.hbm_to_vmem [thread:$0]  %s18, 256, %s20, [#allocation3], 128, 128, 8
    $region5: #{tpu_custom_call.1} parent=1 // pred_fallthru
      _
    // Predicated region
    $region6: #{tpu_custom_call.1} parent=1 // pred_check
      _
    $region7: #{tpu_custom_call.1} parent=1 // pred_check_branch
      %27 = sbr.rel (0) target = $region9
    $region8: #{tpu_custom_call.1} parent=1 // pred_region
      %29 = vsyncadd [#allocation6], 0
      %s30 = sshll.u32 %s1, 4
      %s31 = int_to_ptr.hbm [resolvable:$true] %s30
      %s32 = sshll.u32 [#allocation5], 4
      %s33 = int_to_ptr.vmem [resolvable:$true] %s32
      %38 = dma.hbm_to_vmem [thread:$0]  %s31, 256, %s33, [#allocation6], 128, 128, 8
    $region9: #{tpu_custom_call.1} parent=1 // pred_fallthru
      _
    // Predicated region
    $region10: #{tpu_custom_call.1} parent=1 // pred_check
      _
    $region11: #{tpu_custom_call.1} parent=1 // pred_check_branch
      %40 = sbr.rel (0) target = $region13
    $region12: #{tpu_custom_call.1} parent=1 // pred_region
      %42 = dma.done [#allocation3], 256
    $region13: #{tpu_custom_call.1} parent=1 // pred_fallthru
      _
    // Predicated region
    $region14: #{tpu_custom_call.1} parent=1 // pred_check
      _
    $region15: #{tpu_custom_call.1} parent=1 // pred_check_branch
      %44 = sbr.rel (0) target = $region17
    $region16: #{tpu_custom_call.1} parent=1 // pred_region
      %46 = dma.done [#allocation6], 256
    $region17: #{tpu_custom_call.1} parent=1 // pred_fallthru
      _
    %p47 = scmp.eq.s32.totalorder 0, 0
    // Predicated region
    $region18: #{tpu_custom_call.1} parent=1 // pred_check
      %p48 = pneg %p47
    $region19: #{tpu_custom_call.1} parent=1 // pred_check_branch
      %50 = sbr.rel (%p48) target = $region21
    $region20: #{tpu_custom_call.1} parent=1 // pred_region
      %51 = vst [vmem:[#allocation7] sm:$0xff] 0.0
      %52 = vst [vmem:[#allocation8] sm:$0xff] 0.0
    $region21: #{tpu_custom_call.1} parent=1 // pred_fallthru
      _
    %v53 = vld [vmem:[#allocation2] sm:$0xff]
    %v54 = vld [vmem:[#allocation2 + $0x8] sm:$0xff]
    %v55 = vld [vmem:[#allocation5] sm:$0xff]
    %v56 = vld [vmem:[#allocation5 + $0x8] sm:$0xff]
    %v57 = vsub.f32 %v53, %v55
    %v58 = vsub.f32 %v54, %v56
    %v59 = vand.u32 2147483647, %v57
    %v60 = vand.u32 2147483647, %v58
    %v61 = vadd.f32 %v59, %v60
    %v62 = vmul.f32 %v57, %v57
    %v63 = vmul.f32 %v58, %v58
    %v64 = vadd.f32 %v62, %v63
    %v65 = vadd.f32 %v61, 0.0
    %v66 = vadd.f32 %v64, 0.0
    %v67 = vld [vmem:[#allocation7] sm:$0xff]
    %v68 = vadd.f32 %v67, %v65
    %69 = vst [vmem:[#allocation7] sm:$0xff] %v68
    %v70 = vld [vmem:[#allocation8] sm:$0xff]
    %v71 = vadd.f32 %v70, %v66
    %72 = vst [vmem:[#allocation8] sm:$0xff] %v71
    // Predicated region
    $region22: #{tpu_custom_call.1} parent=1 // pred_check
      _
    $region23: #{tpu_custom_call.1} parent=1 // pred_check_branch
      %74 = sbr.rel (0) target = $region25
    $region24: #{tpu_custom_call.1} parent=1 // pred_region
      %76 = vsyncadd [#allocation4], 0
      %s78 = sshll.u32 [#allocation7], 4
      %s79 = int_to_ptr.vmem [resolvable:$true] %s78
      %s80 = sshll.u32 %s2, 4
      %s81 = int_to_ptr.hbm [resolvable:$true] %s80
      %83 = dma.vmem_to_hbm [thread:$0]  %s79, 128, %s81, [#allocation4]
    $region25: #{tpu_custom_call.1} parent=1 // pred_fallthru
      _
    // Predicated region
    $region26: #{tpu_custom_call.1} parent=1 // pred_check
      _
    $region27: #{tpu_custom_call.1} parent=1 // pred_check_branch
      %85 = sbr.rel (0) target = $region29
    $region28: #{tpu_custom_call.1} parent=1 // pred_region
      %87 = vsyncadd [#allocation9], 0
      %s89 = sshll.u32 [#allocation8], 4
      %s90 = int_to_ptr.vmem [resolvable:$true] %s89
      %s91 = sshll.u32 %s3, 4
      %s92 = int_to_ptr.hbm [resolvable:$true] %s91
      %94 = dma.vmem_to_hbm [thread:$0]  %s90, 128, %s92, [#allocation9]
    $region29: #{tpu_custom_call.1} parent=1 // pred_fallthru
      _
    // Predicated region
    $region30: #{tpu_custom_call.1} parent=1 // pred_check
      _
    $region31: #{tpu_custom_call.1} parent=1 // pred_check_branch
      %96 = sbr.rel (0) target = $region33
    $region32: #{tpu_custom_call.1} parent=1 // pred_region
      %98 = dma.done [#allocation4], 128
    $region33: #{tpu_custom_call.1} parent=1 // pred_fallthru
      _
    // Predicated region
    $region34: #{tpu_custom_call.1} parent=1 // pred_check
      _
    $region35: #{tpu_custom_call.1} parent=1 // pred_check_branch
      %100 = sbr.rel (0) target = $region37
    $region36: #{tpu_custom_call.1} parent=1 // pred_region
      %102 = dma.done [#allocation9], 128
    $region37: #{tpu_custom_call.1} parent=1 // pred_fallthru
      _
    %103 = vsyncpa [#allocation3], 1
    %104 = vsyncpa [#allocation6], 1
    %105 = vsyncpa [#allocation4], 1
    %106 = vsyncpa [#allocation9], 1

</llo_original>
